<compile_context>
chip_gen: v7x
topology: tpu7x:2x2x1
jax: 0.10.0
libtpu: 0.0.40
codegen_flags: <defaults>
</compile_context>

<pallas_src>
import functools

import jax
import jax.numpy as jnp
from jax.experimental import pallas as pl
from jax.experimental.pallas import tpu as pltpu


def _hinge_loss_kernel(x_ref, t_ref, o_ref, *, c, n_total, block_n, needs_mask):
    # x_ref: (block_n, D) native dtype; t_ref: (block_n, 1) float32 labels in {0,1}
    x = x_ref[...].astype(jnp.float32)
    t = t_ref[...]
    sign = 2.0 * t - 1.0                                   # (block_n, 1) -> broadcasts over D
    hinge = jnp.maximum(jnp.float32(c) - sign * x, 0.0)    # relu(c - sign*x)

    if needs_mask:
        # Zero out rows of the (padded) last tile that lie past the real batch size.
        rows = pl.program_id(0) * block_n + jax.lax.broadcasted_iota(
            jnp.int32, (block_n, 1), 0)
        hinge = jnp.where(rows < n_total, hinge, 0.0)

    # Per-tile partial sum; the global mean is finished in the wrapper.
    o_ref[0] = jnp.sum(hinge, keepdims=True)


def hinge_loss(inputs, target, *, c=1.0, block_n=1024):
    """Hinge loss.  inputs: (N, D) float (any dtype), target: (N,) 0/1 labels."""
    if inputs.ndim == 1:
        inputs = inputs.reshape(-1, 1)
    n, d = inputs.shape
    # Target is a narrow (N, 1) f32 column; tiny vs. the (N, D) input stream.
    t = target.reshape(n, 1).astype(jnp.float32)

    # Tile-size selection: as big as possible (amortize per-grid-step overhead)
    # while one (block_n, D) input buffer stays within a ~4 MiB VMEM budget
    # (Pallas double-buffers it) on every TPU generation.
    itemsize = jnp.dtype(inputs.dtype).itemsize
    vmem_budget = 4 * 1024 * 1024
    max_rows = max(8, vmem_budget // max(1, d * itemsize))
    bn = min(block_n, max_rows)
    if bn >= n:
        bn = n                        # single full-array block (no padding needed)
    else:
        bn = max(8, (bn // 8) * 8)    # sublane-aligned tile
    num_blocks = (n + bn - 1) // bn
    needs_mask = (n % bn) != 0

    kernel = functools.partial(
        _hinge_loss_kernel, c=float(c), n_total=n, block_n=bn,
        needs_mask=needs_mask)

    partials = pl.pallas_call(
        kernel,
        out_shape=jax.ShapeDtypeStruct((num_blocks, 1, 1), jnp.float32),
        grid_spec=pltpu.PrefetchScalarGridSpec(
            num_scalar_prefetch=0,
            grid=(num_blocks,),
            in_specs=[
                pl.BlockSpec((bn, d), lambda i: (i, 0)),
                pl.BlockSpec((bn, 1), lambda i: (i, 0)),
            ],
            out_specs=pl.BlockSpec((1, 1, 1), lambda i: (i, 0, 0)),
        ),
        compiler_params=pltpu.CompilerParams(
            dimension_semantics=("parallel",),  # independent tiles -> both TCs on v7x
        ),
    )(inputs, t)

    return jnp.sum(partials) / jnp.float32(n * d)


def hinge_loss_ref(inputs, target, *, c=1.0):
    t = target.reshape(-1, 1).astype(jnp.float32)
    sign = 2.0 * t - 1.0
    loss = jnp.float32(c) - sign * inputs.astype(jnp.float32)
    loss = jnp.where(loss < 0, 0.0, loss)
    return loss.mean()


if __name__ == "__main__":
    key = jax.random.PRNGKey(0)
    k1, k2, k3, k4 = jax.random.split(key, 4)

    # Case 1: (N, D) scores, 0/1 targets broadcast over the feature dim.
    N, D = 128, 8
    inputs = jax.random.normal(k1, (N, D), dtype=jnp.float32)
    target = jax.random.randint(k2, (N,), 0, 2, dtype=jnp.int32)
    loss = jax.block_until_ready(hinge_loss(inputs, target, c=1.0))
    ref = hinge_loss_ref(inputs, target, c=1.0)
    assert jnp.allclose(loss, ref, atol=1e-5, rtol=1e-5), (loss, ref)

    # Case 2: classic binary hinge (D=1), N not a multiple of the tile size
    # (exercises the ragged-tile masking path and multi-block partial sums).
    N2 = 100
    inputs2 = jax.random.normal(k3, (N2, 1), dtype=jnp.float32)
    target2 = jax.random.randint(k4, (N2,), 0, 2, dtype=jnp.int32)
    loss2 = jax.block_until_ready(hinge_loss(inputs2, target2, c=1.0, block_n=32))
    ref2 = hinge_loss_ref(inputs2, target2, c=1.0)
    assert jnp.allclose(loss2, ref2, atol=1e-5, rtol=1e-5), (loss2, ref2)

    # TODO(synk): for D == 1 a lane-dense repack ((N,1) -> (N/128, 128)) of both
    # inputs and targets would further improve vreg/DMA utilization; the current
    # layout keeps the feature dim on lanes and is correct for any D.
    print("KERNEL_OK")
</pallas_src>

<mosaic_0001>
module attributes {stable_mosaic.version = 11 : i64} {
  func.func @_hinge_loss_kernel(%arg0: i32, %arg1: memref<128x8xf32, #tpu.memory_space<vmem>>, %arg2: memref<128x1xf32, #tpu.memory_space<vmem>>, %arg3: memref<1x1x1xf32, #tpu.memory_space<vmem>>) attributes {dimension_semantics = [#tpu.dimension_semantics<parallel>], iteration_bounds = array<i64: 1>, scalar_prefetch = 0 : i64, scratch_operands = 0 : i64, tpu.core_type = #tpu.core_type<tc>, window_params = [{transform_indices = @transform_0, window_bounds = array<i64: 128, 8>}, {transform_indices = @transform_1, window_bounds = array<i64: 128, 1>}, {transform_indices = @transform_2, window_bounds = array<i64: 1, 1, 1>}]} {
    %c0 = arith.constant 0 : index
    %c0_0 = arith.constant 0 : index
    %0 = vector.load %arg1[%c0, %c0_0] : memref<128x8xf32, #tpu.memory_space<vmem>>, vector<128x8xf32>
    %c0_1 = arith.constant 0 : index
    %c0_2 = arith.constant 0 : index
    %1 = vector.load %arg2[%c0_1, %c0_2] : memref<128x1xf32, #tpu.memory_space<vmem>>, vector<128x1xf32>
    %cst = arith.constant 2.000000e+00 : f32
    %2 = vector.broadcast %cst : f32 to vector<128x1xf32>
    %3 = arith.mulf %2, %1 : vector<128x1xf32>
    %cst_3 = arith.constant 1.000000e+00 : f32
    %4 = vector.broadcast %cst_3 : f32 to vector<128x1xf32>
    %5 = arith.subf %3, %4 : vector<128x1xf32>
    %6 = vector.broadcast %5 : vector<128x1xf32> to vector<128x8xf32>
    %7 = arith.mulf %6, %0 : vector<128x8xf32>
    %cst_4 = arith.constant 1.000000e+00 : f32
    %8 = vector.broadcast %cst_4 : f32 to vector<128x8xf32>
    %9 = arith.subf %8, %7 : vector<128x8xf32>
    %cst_5 = arith.constant 0.000000e+00 : f32
    %10 = vector.broadcast %cst_5 : f32 to vector<128x8xf32>
    %11 = arith.maximumf %9, %10 : vector<128x8xf32>
    %12 = vector.shape_cast %11 : vector<128x8xf32> to vector<1x128x8xf32>
    %cst_6 = arith.constant dense<0.000000e+00> : vector<1xf32>
    %13 = vector.multi_reduction <add>, %12, %cst_6 [1, 2] : vector<1x128x8xf32> to vector<1xf32>
    %14 = vector.shape_cast %13 : vector<1xf32> to vector<1x1x1xf32>
    %15 = vector.extract %14[0, 0, 0] : f32 from vector<1x1x1xf32>
    %16 = vector.broadcast %15 : f32 to vector<1x1xf32>
    %c0_7 = arith.constant 0 : index
    %c0_8 = arith.constant 0 : index
    %c0_9 = arith.constant 0 : index
    %17 = vector.load %arg3[%c0_7, %c0_8, %c0_9] : memref<1x1x1xf32, #tpu.memory_space<vmem>>, vector<1x1x1xf32>
    %18 = vector.shape_cast %17 : vector<1x1x1xf32> to vector<1x1xf32>
    %19 = vector.shape_cast %16 : vector<1x1xf32> to vector<1x1x1xf32>
    tpu.vector_store %arg3[%c0_7, %c0_8, %c0_9], %19 {strides = array<i32>} : memref<1x1x1xf32, #tpu.memory_space<vmem>>, vector<1x1x1xf32>,
    return
  }
  func.func @transform_0(%arg0: i32) -> (i32, i32) {
    %c0_i32 = arith.constant 0 : i32
    %c0_i32_0 = arith.constant 0 : i32
    return %arg0, %c0_i32 : i32, i32
  }
  func.func @transform_1(%arg0: i32) -> (i32, i32) {
    %c0_i32 = arith.constant 0 : i32
    %c0_i32_0 = arith.constant 0 : i32
    return %arg0, %c0_i32 : i32, i32
  }
  func.func @transform_2(%arg0: i32) -> (i32, i32, i32) {
    %c0_i32 = arith.constant 0 : i32
    %c0_i32_0 = arith.constant 0 : i32
    %c0_i32_1 = arith.constant 0 : i32
    return %arg0, %c0_i32, %c0_i32_0 : i32, i32, i32
  }
}

</mosaic_0001>

<llo_original>
// kernel: tpu_custom_call.1
$region0: #{tpu_custom_call.1}
  #allocation0 [shape = 'u32[]', space=smem, size = 0x4, offset = 0x4, fixed_abs, tag = 'smem constant byte address 0x4 - core index']
  #allocation1 [shape = 'u32[144,128]{1,0:T(1,128)}', space=vmem, size = 0x12000, scoped, tag = 'internal scratch']
  %s0 = inlined_call_operand.vmem [shape: f32[128,8], index: 0, kind: input, shape index: {}]
  %s1 = inlined_call_operand.vmem [shape: f32[128,1], index: 1, kind: input, shape index: {}]
  %s2 = inlined_call_operand.hbm [shape: f32[1,1,1], index: 2, kind: output, shape index: {}]
  %s3 = sld [smem:[#allocation0]]
  $region18: #{tpu_custom_call.1} parent=0
    _
  %s5 = ssub.s32 1, %s3
  %s6 = scalar_select 0, %s5, %s3
  $region1: #{tpu_custom_call.1} parent=0
    #allocation2 [shape = 'u8[512]{0}', space=vmem, size = 0x400, scoped, tag = 'output window, operand 0, single buffered']
    #allocation3 [shape = 's32[1]{0}', space=sflag, size = 0x4, scoped, tag = 'scoped memory for tpu_custom_call.1']
    %7 = vsyncpa [#allocation3], 0
    // Predicated region
    $region2: #{tpu_custom_call.1} parent=1 // pred_check
      _
    $region3: #{tpu_custom_call.1} parent=1 // pred_check_branch
      %9 = sbr.rel (0) target = $region5
    $region4: #{tpu_custom_call.1} parent=1 // pred_region
      _
    $region5: #{tpu_custom_call.1} parent=1 // pred_fallthru
      _
    // Predicated region
    $region6: #{tpu_custom_call.1} parent=1 // pred_check
      _
    $region7: #{tpu_custom_call.1} parent=1 // pred_check_branch
      %11 = sbr.rel (0) target = $region9
    $region8: #{tpu_custom_call.1} parent=1 // pred_region
      _
    $region9: #{tpu_custom_call.1} parent=1 // pred_fallthru
      _
    %v12 = vld [vmem:[%s0] sm:$0xff]
    %v13 = vld [vmem:[%s0 + $0x8] sm:$0xff]
    %v14 = vld [vmem:[%s0 + $0x10] sm:$0xff]
    %v15 = vld [vmem:[%s0 + $0x18] sm:$0xff]
    %v16 = vld [vmem:[%s0 + $0x20] sm:$0xff]
    %v17 = vld [vmem:[%s0 + $0x28] sm:$0xff]
    %v18 = vld [vmem:[%s0 + $0x30] sm:$0xff]
    %v19 = vld [vmem:[%s0 + $0x38] sm:$0xff]
    %v20 = vld [vmem:[%s0 + $0x40] sm:$0xff]
    %v21 = vld [vmem:[%s0 + $0x48] sm:$0xff]
    %v22 = vld [vmem:[%s0 + $0x50] sm:$0xff]
    %v23 = vld [vmem:[%s0 + $0x58] sm:$0xff]
    %v24 = vld [vmem:[%s0 + $0x60] sm:$0xff]
    %v25 = vld [vmem:[%s0 + $0x68] sm:$0xff]
    %v26 = vld [vmem:[%s0 + $0x70] sm:$0xff]
    %v27 = vld [vmem:[%s0 + $0x78] sm:$0xff]
    %v28 = vld [vmem:[%s1] sm:$0xff]
    %v29 = vld [vmem:[%s1 + $0x8] sm:$0xff]
    %v30 = vld [vmem:[%s1 + $0x10] sm:$0xff]
    %v31 = vld [vmem:[%s1 + $0x18] sm:$0xff]
    %v32 = vld [vmem:[%s1 + $0x20] sm:$0xff]
    %v33 = vld [vmem:[%s1 + $0x28] sm:$0xff]
    %v34 = vld [vmem:[%s1 + $0x30] sm:$0xff]
    %v35 = vld [vmem:[%s1 + $0x38] sm:$0xff]
    %v36 = vld [vmem:[%s1 + $0x40] sm:$0xff]
    %v37 = vld [vmem:[%s1 + $0x48] sm:$0xff]
    %v38 = vld [vmem:[%s1 + $0x50] sm:$0xff]
    %v39 = vld [vmem:[%s1 + $0x58] sm:$0xff]
    %v40 = vld [vmem:[%s1 + $0x60] sm:$0xff]
    %v41 = vld [vmem:[%s1 + $0x68] sm:$0xff]
    %v42 = vld [vmem:[%s1 + $0x70] sm:$0xff]
    %v43 = vld [vmem:[%s1 + $0x78] sm:$0xff]
    %v44 = vmul.f32 %v28, 2.0
    %v45 = vmul.f32 %v29, 2.0
    %v46 = vmul.f32 %v30, 2.0
    %v47 = vmul.f32 %v31, 2.0
    %v48 = vmul.f32 %v32, 2.0
    %v49 = vmul.f32 %v33, 2.0
    %v50 = vmul.f32 %v34, 2.0
    %v51 = vmul.f32 %v35, 2.0
    %v52 = vmul.f32 %v36, 2.0
    %v53 = vmul.f32 %v37, 2.0
    %v54 = vmul.f32 %v38, 2.0
    %v55 = vmul.f32 %v39, 2.0
    %v56 = vmul.f32 %v40, 2.0
    %v57 = vmul.f32 %v41, 2.0
    %v58 = vmul.f32 %v42, 2.0
    %v59 = vmul.f32 %v43, 2.0
    %v60 = vsub.f32 %v44, 1.0
    %v61 = vsub.f32 %v45, 1.0
    %v62 = vsub.f32 %v46, 1.0
    %v63 = vsub.f32 %v47, 1.0
    %v64 = vsub.f32 %v48, 1.0
    %v65 = vsub.f32 %v49, 1.0
    %v66 = vsub.f32 %v50, 1.0
    %v67 = vsub.f32 %v51, 1.0
    %v68 = vsub.f32 %v52, 1.0
    %v69 = vsub.f32 %v53, 1.0
    %v70 = vsub.f32 %v54, 1.0
    %v71 = vsub.f32 %v55, 1.0
    %v72 = vsub.f32 %v56, 1.0
    %v73 = vsub.f32 %v57, 1.0
    %v74 = vsub.f32 %v58, 1.0
    %v75 = vsub.f32 %v59, 1.0
    %77 = vset.pattern.permute.xlu0 0
    %78 = vperm.xlu0 %77, %v60
    %v79 = vpop.permute.xlu0 %78
    %82 = vset.pattern.permute.xlu0 0
    %83 = vperm.xlu0 %82, %v61
    %v84 = vpop.permute.xlu0 %83
    %87 = vset.pattern.permute.xlu0 0
    %88 = vperm.xlu0 %87, %v62
    %v89 = vpop.permute.xlu0 %88
    %92 = vset.pattern.permute.xlu0 0
    %93 = vperm.xlu0 %92, %v63
    %v94 = vpop.permute.xlu0 %93
    %97 = vset.pattern.permute.xlu0 0
    %98 = vperm.xlu0 %97, %v64
    %v99 = vpop.permute.xlu0 %98
    %102 = vset.pattern.permute.xlu0 0
    %103 = vperm.xlu0 %102, %v65
    %v104 = vpop.permute.xlu0 %103
    %107 = vset.pattern.permute.xlu0 0
    %108 = vperm.xlu0 %107, %v66
    %v109 = vpop.permute.xlu0 %108
    %112 = vset.pattern.permute.xlu0 0
    %113 = vperm.xlu0 %112, %v67
    %v114 = vpop.permute.xlu0 %113
    %117 = vset.pattern.permute.xlu0 0
    %118 = vperm.xlu0 %117, %v68
    %v119 = vpop.permute.xlu0 %118
    %122 = vset.pattern.permute.xlu0 0
    %123 = vperm.xlu0 %122, %v69
    %v124 = vpop.permute.xlu0 %123
    %127 = vset.pattern.permute.xlu0 0
    %128 = vperm.xlu0 %127, %v70
    %v129 = vpop.permute.xlu0 %128
    %132 = vset.pattern.permute.xlu0 0
    %133 = vperm.xlu0 %132, %v71
    %v134 = vpop.permute.xlu0 %133
    %137 = vset.pattern.permute.xlu0 0
    %138 = vperm.xlu0 %137, %v72
    %v139 = vpop.permute.xlu0 %138
    %142 = vset.pattern.permute.xlu0 0
    %143 = vperm.xlu0 %142, %v73
    %v144 = vpop.permute.xlu0 %143
    %147 = vset.pattern.permute.xlu0 0
    %148 = vperm.xlu0 %147, %v74
    %v149 = vpop.permute.xlu0 %148
    %152 = vset.pattern.permute.xlu0 0
    %153 = vperm.xlu0 %152, %v75
    %v154 = vpop.permute.xlu0 %153
    %v156 = vmul.f32 %v79, %v12
    %v157 = vmul.f32 %v84, %v13
    %v158 = vmul.f32 %v89, %v14
    %v159 = vmul.f32 %v94, %v15
    %v160 = vmul.f32 %v99, %v16
    %v161 = vmul.f32 %v104, %v17
    %v162 = vmul.f32 %v109, %v18
    %v163 = vmul.f32 %v114, %v19
    %v164 = vmul.f32 %v119, %v20
    %v165 = vmul.f32 %v124, %v21
    %v166 = vmul.f32 %v129, %v22
    %v167 = vmul.f32 %v134, %v23
    %v168 = vmul.f32 %v139, %v24
    %v169 = vmul.f32 %v144, %v25
    %v170 = vmul.f32 %v149, %v26
    %v171 = vmul.f32 %v154, %v27
    %v172 = vsub.f32 1.0, %v156
    %v173 = vsub.f32 1.0, %v157
    %v174 = vsub.f32 1.0, %v158
    %v175 = vsub.f32 1.0, %v159
    %v176 = vsub.f32 1.0, %v160
    %v177 = vsub.f32 1.0, %v161
    %v178 = vsub.f32 1.0, %v162
    %v179 = vsub.f32 1.0, %v163
    %v180 = vsub.f32 1.0, %v164
    %v181 = vsub.f32 1.0, %v165
    %v182 = vsub.f32 1.0, %v166
    %v183 = vsub.f32 1.0, %v167
    %v184 = vsub.f32 1.0, %v168
    %v185 = vsub.f32 1.0, %v169
    %v186 = vsub.f32 1.0, %v170
    %v187 = vsub.f32 1.0, %v171
    %v188 = vmax.f32 %v172, 0.0
    %v189 = vmax.f32 %v173, 0.0
    %v190 = vmax.f32 %v174, 0.0
    %v191 = vmax.f32 %v175, 0.0
    %v192 = vmax.f32 %v176, 0.0
    %v193 = vmax.f32 %v177, 0.0
    %v194 = vmax.f32 %v178, 0.0
    %v195 = vmax.f32 %v179, 0.0
    %v196 = vmax.f32 %v180, 0.0
    %v197 = vmax.f32 %v181, 0.0
    %v198 = vmax.f32 %v182, 0.0
    %v199 = vmax.f32 %v183, 0.0
    %v200 = vmax.f32 %v184, 0.0
    %v201 = vmax.f32 %v185, 0.0
    %v202 = vmax.f32 %v186, 0.0
    %v203 = vmax.f32 %v187, 0.0
    %vm204 = vcmask 64512
    %v205 = vsel %vm204, %v188, 0.0
    %v206 = vsel %vm204, %v189, 0.0
    %v207 = vadd.f32 %v205, %v206
    %v208 = vsel %vm204, %v190, 0.0
    %v209 = vadd.f32 %v207, %v208
    %v210 = vsel %vm204, %v191, 0.0
    %v211 = vadd.f32 %v209, %v210
    %v212 = vsel %vm204, %v192, 0.0
    %v213 = vadd.f32 %v211, %v212
    %v214 = vsel %vm204, %v193, 0.0
    %v215 = vadd.f32 %v213, %v214
    %v216 = vsel %vm204, %v194, 0.0
    %v217 = vadd.f32 %v215, %v216
    %v218 = vsel %vm204, %v195, 0.0
    %v219 = vadd.f32 %v217, %v218
    %v220 = vsel %vm204, %v196, 0.0
    %v221 = vadd.f32 %v219, %v220
    %v222 = vsel %vm204, %v197, 0.0
    %v223 = vadd.f32 %v221, %v222
    %v224 = vsel %vm204, %v198, 0.0
    %v225 = vadd.f32 %v223, %v224
    %v226 = vsel %vm204, %v199, 0.0
    %v227 = vadd.f32 %v225, %v226
    %v228 = vsel %vm204, %v200, 0.0
    %v229 = vadd.f32 %v227, %v228
    %v230 = vsel %vm204, %v201, 0.0
    %v231 = vadd.f32 %v229, %v230
    %v232 = vsel %vm204, %v202, 0.0
    %v233 = vadd.f32 %v231, %v232
    %v234 = vsel %vm204, %v203, 0.0
    %v235 = vadd.f32 %v233, %v234
    %236 = vadd.xlane.f32.xlu0 %v235
    %v237 = vpop.xlane.xlu0 %236
    %v238 = vrot.slane %v237, 4
    %v239 = vadd.f32 %v237, %v238
    %v240 = vrot.slane %v239, 2
    %v241 = vadd.f32 %v239, %v240
    %v242 = vrot.slane %v241, 1
    %v243 = vadd.f32 %v241, %v242
    %s244 = vtos %v243
    %v245 = vstv %s244
    %vm246 = vcmask 0
    %247 = vst.msk [vmem:[#allocation2] sm:$0x1] %vm246, %v245
    // Predicated region
    $region10: #{tpu_custom_call.1} parent=1 // pred_check
      _
    $region11: #{tpu_custom_call.1} parent=1 // pred_check_branch
      %249 = sbr.rel (0) target = $region13
    $region12: #{tpu_custom_call.1} parent=1 // pred_region
      %s251 = ssub.s32 16, 16
      %252 = vsyncadd [#allocation3], %s251
      %s254 = sshll.u32 [#allocation2], 4
      %s255 = int_to_ptr.vmem [resolvable:$true] %s254
      %257 = dma.vmem_to_hbm [thread:$0]  %s255, 16, %s2, [#allocation3]
    $region13: #{tpu_custom_call.1} parent=1 // pred_fallthru
      _
    // Predicated region
    $region14: #{tpu_custom_call.1} parent=1 // pred_check
      _
    $region15: #{tpu_custom_call.1} parent=1 // pred_check_branch
      %259 = sbr.rel (0) target = $region17
    $region16: #{tpu_custom_call.1} parent=1 // pred_region
      %260 = dma.done [#allocation3], 16
    $region17: #{tpu_custom_call.1} parent=1 // pred_fallthru
      _
    %261 = vsyncpa [#allocation3], 1

</llo_original>
